<compile_context>
chip_gen: v7x
topology: tpu7x:2x2x1
jax: 0.10.0
libtpu: 0.0.40
codegen_flags: <defaults>
</compile_context>

<pallas_src>
import math
from typing import NamedTuple, Optional

import jax
import jax.numpy as jnp
from jax.experimental import pallas as pl
from jax.experimental.pallas import tpu as pltpu


def _round_up(n: int, m: int) -> int:
    return ((n + m - 1) // m) * m


# -----------------------------------------------------------------------------
# Hardware-aware defaults
# -----------------------------------------------------------------------------
def _hardware_defaults():
    """Generation-tuned tile ceilings + VMEM budget.

    v5e/v6e: 128 MiB VMEM -> big tm (toward the compute ridge), ti up to 512,
             vmem_limit raised to 100 MiB.
    v7x:      64 MiB VMEM per TC -> ti capped at 256, vmem_limit 56 MiB.
    """
    vmem_cap = 64 * 1024 * 1024
    n_cores = 1
    try:
        info = pltpu.get_tpu_info()
        v = getattr(info, "vmem_capacity_bytes", None)
        if isinstance(v, int) and v > 0:
            vmem_cap = v
        for attr in ("num_tensorcores", "tensorcore_count", "num_cores_per_chip"):
            c = getattr(info, attr, None)
            if isinstance(c, int) and c > 0:
                n_cores = min(c, 2)
                break
    except Exception:
        pass
    if vmem_cap >= 100 * 1024 * 1024:            # v5e / v6e (128 MiB physical)
        return dict(vmem_limit=100 * 1024 * 1024, tm_max=512, ti_max=512,
                    n_cores=n_cores)
    else:                                        # v7x (64 MiB per TC)
        return dict(vmem_limit=56 * 1024 * 1024, tm_max=384, ti_max=256,
                    n_cores=n_cores)


def _choose_ti(H: int, I: int, tm_budget: int, ti_max: int,
               vmem_limit: int, out_bytes: int = 4) -> int:
    """Largest ti (multiple of 128, <= ti_max) whose double-buffered weight tiles
    plus activation tiles (for the largest tm we may use) fit the VMEM budget."""
    # x (bf16, x2 buffers) + out (x2 buffers) + f32 accumulator, at tm = tm_budget
    act_bytes = 2 * tm_budget * H * 2 + 2 * tm_budget * H * out_bytes + tm_budget * H * 4
    budget = int(vmem_limit * 0.85) - act_bytes
    # per unit of ti: wgu tile (H * 2*ti * 2B) + wd tile (ti * H * 2B), each x2 buffers
    per_ti = 12 * H
    ti = budget // per_ti if budget > 0 else 128
    ti = max(128, (ti // 128) * 128)
    ti = min(ti, ti_max, _round_up(I, 128))
    return int(ti)


def _choose_tm(M: int, tm_max: int) -> int:
    """Even split of M into ceil(M / tm_max) tiles, rounded up to 16 so bf16
    blocks never fall below the (16, 128) sublane-packing tile."""
    n_m = max(1, math.ceil(M / tm_max))
    return _round_up(math.ceil(M / n_m), 16)


# -----------------------------------------------------------------------------
# Weight packing (hoist out of the per-call hot path; cache at weight-load time)
# -----------------------------------------------------------------------------
class PackedLlamaMLPWeights(NamedTuple):
    wgu: jax.Array            # [H, nI * 2*ti]  per-tile interleaved [gate_j | up_j]
    wd: jax.Array             # [nI * ti, H]    zero-padded down_proj weights
    hidden_size: int
    intermediate_size: int    # un-padded I
    ti: int
    n_i_tiles: int


def pack_llama_mlp_weights(wg, wu, wd, *, ti: Optional[int] = None,
                           compute_dtype=jnp.bfloat16) -> PackedLlamaMLPWeights:
    """One-time repack: bf16 cast, pad I to a multiple of ti, interleave gate/up
    column tiles so every grid step DMAs a single lane-dense [H, 2*ti] slab.

    wg, wu : [H, I]  (transposed vs torch.nn.Linear's [out, in])
    wd     : [I, H]
    """
    H, I = wg.shape
    hw = _hardware_defaults()
    if ti is None:
        ti = _choose_ti(H, I, hw["tm_max"], hw["ti_max"], hw["vmem_limit"])
    assert ti % 128 == 0, "ti must be a multiple of 128 (lane width)"
    Ip = _round_up(I, ti)

    wgc = wg.astype(compute_dtype)
    wuc = wu.astype(compute_dtype)
    wdc = wd.astype(compute_dtype)
    if Ip != I:   # zero padding is exact: silu(0) * 0 == 0, padded wd rows are zero
        wgc = jnp.pad(wgc, ((0, 0), (0, Ip - I)))
        wuc = jnp.pad(wuc, ((0, 0), (0, Ip - I)))
        wdc = jnp.pad(wdc, ((0, Ip - I), (0, 0)))
    nI = Ip // ti
    wgu = jnp.concatenate(
        [wgc.reshape(H, nI, ti), wuc.reshape(H, nI, ti)], axis=2
    ).reshape(H, nI * 2 * ti)
    return PackedLlamaMLPWeights(wgu=wgu, wd=wdc, hidden_size=H,
                                 intermediate_size=I, ti=ti, n_i_tiles=nI)


# -----------------------------------------------------------------------------
# Kernel
# -----------------------------------------------------------------------------
def _llama_mlp_kernel(x_ref, wgu_ref, wd_ref, o_ref, acc_ref):
    # grid = (I-split [parallel], M tiles [parallel], I tiles [arbitrary, last])
    j = pl.program_id(2)

    @pl.when(j == 0)
    def _():
        acc_ref[...] = jnp.zeros_like(acc_ref)

    x = x_ref[...]                                                      # [tm, H] bf16
    # Fused gate|up projection: one MXU dot [tm, H] @ [H, 2*ti], f32 accumulate.
    gu = jnp.dot(x, wgu_ref[...], preferred_element_type=jnp.float32)   # [tm, 2*ti]
    ti = wgu_ref.shape[1] // 2                                          # static
    gate = gu[:, :ti]
    up = gu[:, ti:]
    # SiLU in f32: sigmoid goes to the EUP slot, muls to the VPU — free filler
    # under the MXU-bound dots.
    h = (gate * jax.nn.sigmoid(gate)) * up                              # [tm, ti] f32
    acc_ref[...] += jnp.dot(h.astype(wd_ref.dtype), wd_ref[...],
                            preferred_element_type=jnp.float32)         # [tm, H] f32

    @pl.when(j == pl.num_programs(2) - 1)
    def _():
        o_ref[...] = acc_ref[...].astype(o_ref.dtype)


# -----------------------------------------------------------------------------
# Wrappers
# -----------------------------------------------------------------------------
def llama_mlp_packed(x, packed: PackedLlamaMLPWeights, *, tm: Optional[int] = None,
                     out_dtype=None, n_split: Optional[int] = None,
                     vmem_limit_bytes: Optional[int] = None,
                     compute_dtype=jnp.bfloat16):
    """down_proj( silu(x @ wg) * (x @ wu) ) using pre-packed weights (hot path)."""
    orig_shape = x.shape
    H = packed.hidden_size
    assert orig_shape[-1] == H, "trailing dim of x must equal hidden_size"
    x2d = x.reshape(-1, H).astype(compute_dtype)
    M = x2d.shape[0]
    ti, nI = packed.ti, packed.n_i_tiles
    out_dtype = x.dtype if out_dtype is None else out_dtype

    hw = _hardware_defaults()
    if vmem_limit_bytes is None:
        vmem_limit_bytes = hw["vmem_limit"]
    if tm is None:
        tm = _choose_tm(M, hw["tm_max"])
    else:
        tm = _round_up(tm, 16)

    Mp = _round_up(M, tm)
    if Mp != M:
        x2d = jnp.pad(x2d, ((0, Mp - M), (0, 0)))
    m_tiles = Mp // tm

    # Decode path (v7x, 2 TCs): if a single M tile would leave a core idle, split
    # the intermediate axis across a leading parallel grid axis; partial [M, H]
    # sums (f32) are added outside the kernel.
    if n_split is None:
        n_split = hw["n_cores"] if m_tiles < hw["n_cores"] else 1
    n_split = max(1, min(int(n_split), nI))
    while nI % n_split != 0:
        n_split -= 1
    nI_split = nI // n_split
    partial_dtype = jnp.float32 if n_split > 1 else out_dtype

    out = pl.pallas_call(
        _llama_mlp_kernel,
        out_shape=jax.ShapeDtypeStruct((n_split, Mp, H), partial_dtype),
        grid_spec=pltpu.PrefetchScalarGridSpec(
            num_scalar_prefetch=0,
            grid=(n_split, m_tiles, nI_split),
            in_specs=[
                # x tile (re-used across the reduction axis and any I-split)
                pl.BlockSpec((tm, H), lambda c, i, j: (i, 0)),
                # fused gate|up weight slab for intermediate tile (c*nI_split + j)
                pl.BlockSpec((H, 2 * ti), lambda c, i, j: (0, c * nI_split + j)),
                # down_proj rows for the same intermediate tile
                pl.BlockSpec((ti, H), lambda c, i, j: (c * nI_split + j, 0)),
            ],
            out_specs=pl.BlockSpec((None, tm, H), lambda c, i, j: (c, i, 0)),
            scratch_shapes=[pltpu.VMEM((tm, H), jnp.float32)],
        ),
        compiler_params=pltpu.CompilerParams(
            dimension_semantics=("parallel", "parallel", "arbitrary"),
            vmem_limit_bytes=vmem_limit_bytes,
        ),
    )(x2d, packed.wgu, packed.wd)

    if n_split > 1:
        out = out.sum(axis=0).astype(out_dtype)
    else:
        out = out[0].astype(out_dtype)
    if Mp != M:
        out = out[:M]
    return out.reshape(orig_shape[:-1] + (H,))


def llama_mlp(x, wg, wu, wd, *, compute_dtype=jnp.bfloat16,
              ti: Optional[int] = None, **kwargs):
    """Convenience one-shot wrapper.  For repeated calls (the hot path), call
    pack_llama_mlp_weights() once at weight-load time and reuse the result with
    llama_mlp_packed(); the repack otherwise re-streams the full gate/up weights
    through HBM on every invocation."""
    packed = pack_llama_mlp_weights(wg, wu, wd, ti=ti, compute_dtype=compute_dtype)
    return llama_mlp_packed(x, packed, compute_dtype=compute_dtype, **kwargs)


def llama_mlp_ref(x, wg, wu, wd, compute_dtype=jnp.bfloat16):
    """Pure-JAX reference with the same bf16-compute / f32-accumulate scheme."""
    c = compute_dtype
    gate = jnp.dot(x.astype(c), wg.astype(c), preferred_element_type=jnp.float32)
    up = jnp.dot(x.astype(c), wu.astype(c), preferred_element_type=jnp.float32)
    h = (gate * jax.nn.sigmoid(gate)) * up
    out = jnp.dot(h.astype(c), wd.astype(c), preferred_element_type=jnp.float32)
    return out.astype(x.dtype)


if __name__ == "__main__":
    # Small LLaMA-like config: hidden_size=256, intermediate_size=512,
    # batch=2, seq=8, hidden_act="silu", pretraining_tp=1.
    batch, seq = 2, 8
    hidden_size = 256
    intermediate_size = 512

    key = jax.random.PRNGKey(0)
    kx, kg, ku, kd = jax.random.split(key, 4)

    x = jax.random.normal(kx, (batch, seq, hidden_size), dtype=jnp.float32)
    # torch Linear weight is [out, in]; store transposed ([in, out]) for the kernel.
    wg = jax.random.normal(kg, (hidden_size, intermediate_size), dtype=jnp.float32) * 0.02
    wu = jax.random.normal(ku, (hidden_size, intermediate_size), dtype=jnp.float32) * 0.02
    wd = jax.random.normal(kd, (intermediate_size, hidden_size), dtype=jnp.float32) * 0.02

    ref = llama_mlp_ref(x, wg, wu, wd)

    # Hot-path usage: pack once, call many times.
    packed = pack_llama_mlp_weights(wg, wu, wd)
    out = jax.block_until_ready(llama_mlp_packed(x, packed))
    assert out.shape == (batch, seq, hidden_size)
    assert out.dtype == x.dtype
    assert jnp.allclose(out, ref, atol=2e-3, rtol=2e-2), "mismatch vs reference (packed)"

    # Exercise the decode I-split path (leading parallel grid axis + partial-sum add).
    packed2 = pack_llama_mlp_weights(wg, wu, wd, ti=256)
    out2 = jax.block_until_ready(llama_mlp_packed(x, packed2, n_split=2))
    assert jnp.allclose(out2, ref, atol=2e-3, rtol=2e-2), "mismatch vs reference (split)"

    # Convenience one-shot wrapper.
    out3 = jax.block_until_ready(llama_mlp(x, wg, wu, wd))
    assert jnp.allclose(out3, ref, atol=2e-3, rtol=2e-2), "mismatch vs reference (one-shot)"

    print("KERNEL_OK")
</pallas_src>

<mosaic_0001>
module attributes {stable_mosaic.version = 11 : i64} {
  func.func @_llama_mlp_kernel(%arg0: i32, %arg1: i32, %arg2: i32, %arg3: memref<16x256xbf16, #tpu.memory_space<vmem>>, %arg4: memref<256x512xbf16, #tpu.memory_space<vmem>>, %arg5: memref<256x256xbf16, #tpu.memory_space<vmem>>, %arg6: memref<1x16x256xf32, #tpu.memory_space<vmem>>, %arg7: memref<16x256xf32, #tpu.memory_space<vmem>>) attributes {dimension_semantics = [#tpu.dimension_semantics<parallel>, #tpu.dimension_semantics<parallel>, #tpu.dimension_semantics<arbitrary>], iteration_bounds = array<i64: 1, 1, 2>, scalar_prefetch = 0 : i64, scratch_operands = 1 : i64, tpu.core_type = #tpu.core_type<tc>, window_params = [{transform_indices = @transform_0, window_bounds = array<i64: 16, 256>}, {transform_indices = @transform_1, window_bounds = array<i64: 256, 512>}, {transform_indices = @transform_2, window_bounds = array<i64: 256, 256>}, {transform_indices = @transform_3, window_bounds = array<i64: 1, 16, 256>}]} {
    %c0_i32 = arith.constant 0 : i32
    %0 = arith.cmpi eq, %arg2, %c0_i32 : i32
    %1 = arith.extui %0 : i1 to i32
    %c0_i32_0 = arith.constant 0 : i32
    %2 = arith.cmpi ne, %1, %c0_i32_0 : i32
    scf.if %2 {
      %cst_13 = arith.constant 0.000000e+00 : f32
      %24 = vector.broadcast %cst_13 : f32 to vector<16x256xf32>
      %c0_14 = arith.constant 0 : index
      %c0_15 = arith.constant 0 : index
      %25 = vector.load %arg7[%c0_14, %c0_15] : memref<16x256xf32, #tpu.memory_space<vmem>>, vector<16x256xf32>
      tpu.vector_store %arg7[%c0_14, %c0_15], %24 {strides = array<i32>} : memref<16x256xf32, #tpu.memory_space<vmem>>, vector<16x256xf32>,
    } else {
    }
    %c0 = arith.constant 0 : index
    %c0_1 = arith.constant 0 : index
    %3 = vector.load %arg3[%c0, %c0_1] : memref<16x256xbf16, #tpu.memory_space<vmem>>, vector<16x256xbf16>
    %c0_2 = arith.constant 0 : index
    %c0_3 = arith.constant 0 : index
    %4 = vector.load %arg4[%c0_2, %c0_3] : memref<256x512xbf16, #tpu.memory_space<vmem>>, vector<256x512xbf16>
    %cst = arith.constant dense<0.000000e+00> : vector<16x512xf32>
    %5 = tpu.matmul %3, %4, %cst {dimension_numbers = #tpu.dot_dimension_numbers<[1], [0], [0], [1], [0, 0, 1, 1], [], []>} : vector<16x256xbf16>, vector<256x512xbf16>, vector<16x512xf32> -> vector<16x512xf32>
    %6 = vector.extract_strided_slice %5 {offsets = [0, 0], sizes = [16, 256], strides = [1, 1]} : vector<16x512xf32> to vector<16x256xf32>
    %7 = vector.extract_strided_slice %5 {offsets = [0, 256], sizes = [16, 256], strides = [1, 1]} : vector<16x512xf32> to vector<16x256xf32>
    %8 = arith.negf %6 : vector<16x256xf32>
    %9 = math.exp %8 : vector<16x256xf32>
    %cst_4 = arith.constant 1.000000e+00 : f32
    %10 = vector.broadcast %cst_4 : f32 to vector<16x256xf32>
    %11 = arith.addf %10, %9 : vector<16x256xf32>
    %12 = arith.divf %10, %11 : vector<16x256xf32>
    %13 = arith.mulf %6, %12 : vector<16x256xf32>
    %14 = arith.mulf %13, %7 : vector<16x256xf32>
    %c0_5 = arith.constant 0 : index
    %c0_6 = arith.constant 0 : index
    %15 = vector.load %arg7[%c0_5, %c0_6] : memref<16x256xf32, #tpu.memory_space<vmem>>, vector<16x256xf32>
    %16 = arith.truncf %14 : vector<16x256xf32> to vector<16x256xbf16>
    %c0_7 = arith.constant 0 : index
    %c0_8 = arith.constant 0 : index
    %17 = vector.load %arg5[%c0_7, %c0_8] : memref<256x256xbf16, #tpu.memory_space<vmem>>, vector<256x256xbf16>
    %cst_9 = arith.constant dense<0.000000e+00> : vector<16x256xf32>
    %18 = tpu.matmul %16, %17, %cst_9 {dimension_numbers = #tpu.dot_dimension_numbers<[1], [0], [0], [1], [0, 0, 1, 1], [], []>} : vector<16x256xbf16>, vector<256x256xbf16>, vector<16x256xf32> -> vector<16x256xf32>
    %19 = arith.addf %15, %18 : vector<16x256xf32>
    %c0_10 = arith.constant 0 : index
    %c0_11 = arith.constant 0 : index
    %20 = vector.load %arg7[%c0_10, %c0_11] : memref<16x256xf32, #tpu.memory_space<vmem>>, vector<16x256xf32>
    tpu.vector_store %arg7[%c0_10, %c0_11], %19 {strides = array<i32>} : memref<16x256xf32, #tpu.memory_space<vmem>>, vector<16x256xf32>,
    %c1_i32 = arith.constant 1 : i32
    %21 = arith.cmpi eq, %arg2, %c1_i32 : i32
    %22 = arith.extui %21 : i1 to i32
    %c0_i32_12 = arith.constant 0 : i32
    %23 = arith.cmpi ne, %22, %c0_i32_12 : i32
    scf.if %23 {
      %c0_13 = arith.constant 0 : index
      %c0_14 = arith.constant 0 : index
      %24 = vector.load %arg7[%c0_13, %c0_14] : memref<16x256xf32, #tpu.memory_space<vmem>>, vector<16x256xf32>
      %c0_15 = arith.constant 0 : index
      %c0_16 = arith.constant 0 : index
      %c0_17 = arith.constant 0 : index
      %25 = vector.load %arg6[%c0_15, %c0_16, %c0_17] : memref<1x16x256xf32, #tpu.memory_space<vmem>>, vector<1x16x256xf32>
      %26 = vector.shape_cast %25 : vector<1x16x256xf32> to vector<16x256xf32>
      %27 = vector.shape_cast %24 : vector<16x256xf32> to vector<1x16x256xf32>
      tpu.vector_store %arg6[%c0_15, %c0_16, %c0_17], %27 {strides = array<i32>} : memref<1x16x256xf32, #tpu.memory_space<vmem>>, vector<1x16x256xf32>,
    } else {
    }
    return
  }
  func.func @transform_0(%arg0: i32, %arg1: i32, %arg2: i32) -> (i32, i32) {
    %c0_i32 = arith.constant 0 : i32
    %c0_i32_0 = arith.constant 0 : i32
    return %arg1, %c0_i32 : i32, i32
  }
  func.func @transform_1(%arg0: i32, %arg1: i32, %arg2: i32) -> (i32, i32) {
    %c2_i32 = arith.constant 2 : i32
    %0 = arith.muli %arg0, %c2_i32 : i32
    %1 = arith.addi %0, %arg2 : i32
    %c0_i32 = arith.constant 0 : i32
    %c0_i32_0 = arith.constant 0 : i32
    return %c0_i32, %1 : i32, i32
  }
  func.func @transform_2(%arg0: i32, %arg1: i32, %arg2: i32) -> (i32, i32) {
    %c2_i32 = arith.constant 2 : i32
    %0 = arith.muli %arg0, %c2_i32 : i32
    %1 = arith.addi %0, %arg2 : i32
    %c0_i32 = arith.constant 0 : i32
    %c0_i32_0 = arith.constant 0 : i32
    return %1, %c0_i32 : i32, i32
  }
  func.func @transform_3(%arg0: i32, %arg1: i32, %arg2: i32) -> (i32, i32, i32) {
    %c0_i32 = arith.constant 0 : i32
    %c0_i32_0 = arith.constant 0 : i32
    return %arg0, %arg1, %c0_i32 : i32, i32, i32
  }
}

</mosaic_0001>

<llo_original>
// kernel: tpu_custom_call.1
$region0: #{tpu_custom_call.1}
  #allocation0 [shape = 'u32[]', space=smem, size = 0x4, offset = 0x4, fixed_abs, tag = 'smem constant byte address 0x4 - core index']
  #allocation1 [shape = 'u32[144,128]{1,0:T(1,128)}', space=vmem, size = 0x12000, scoped, tag = 'internal scratch']
  #allocation2 [shape = 'f32[16,256]{1,0:T(8,128)}', space=vmem, size = 0x4000, scoped, tag = 'scratch operand']
  %s0 = inlined_call_operand.hbm [shape: bf16[16,256], index: 0, kind: input, shape index: {}]
  %s1 = inlined_call_operand.hbm [shape: bf16[256,1024], index: 1, kind: input, shape index: {}]
  %s2 = inlined_call_operand.hbm [shape: bf16[512,256], index: 2, kind: input, shape index: {}]
  %s3 = inlined_call_operand.hbm [shape: f32[1,16,256], index: 3, kind: output, shape index: {}]
  %s4 = sld [smem:[#allocation0]]
  $region65: #{tpu_custom_call.1} parent=0
    _
  %s6 = ssub.s32 1, %s4
  %s7 = scalar_select 0, %s6, %s4
  $region1: #{tpu_custom_call.1} parent=0
    #allocation3 [shape = 'u8[8192]{0}', space=vmem, size = 0x2000, scoped, tag = 'input window, operand 0, single buffered']
    #allocation4 [shape = 's32[2]{0}', space=sflag, size = 0x8, scoped, tag = 'scoped memory for tpu_custom_call.1']
    #allocation5 [shape = 's32[2]{0}', space=sflag, size = 0x8, scoped, tag = 'scoped memory for tpu_custom_call.1']
    #allocation6 [shape = 'u8[524288]{0}', space=vmem, size = 0x80000, scoped, tag = 'input window, operand 1']
    #allocation7 [shape = 's32[2]{0}', space=sflag, size = 0x8, scoped, tag = 'scoped memory for tpu_custom_call.1']
    #allocation8 [shape = 'u8[262144]{0}', space=vmem, size = 0x40000, scoped, tag = 'input window, operand 2']
    #allocation9 [shape = 'u8[16384]{0}', space=vmem, size = 0x4000, scoped, tag = 'output window, operand 0, single buffered']
    %8 = vsyncpa [#allocation4], 0
    %9 = vsyncpa [#allocation7], 0
    %s10 = scalar_lea.sflag [#allocation7], 1
    %11 = vsyncpa %s10, 0
    %12 = vsyncpa [#allocation5], 0
    loop: start=0, step=1, limit=4
    $region2: #{tpu_custom_call.1} parent=1 // loop_pre_header
      _
    $region3: #{tpu_custom_call.1} parent=1 // loop_header
      %s14 = sphi 0, %s18
      %p15 = scmp.ge.s32.totalorder %s14, 4
      %s21 = sphi 0, %s40
      %s22 = sphi 0, %s36
      %s23 = sphi 0, %s32
      %s24 = sphi 0, %s21
      %s25 = sphi 0, %s22
      %s26 = sphi 0, %s23
      %s27 = sphi 0, %s24
      %s28 = sphi 0, %s25
      %s29 = sphi 0, %s26
      %s43 = sphi 0, %s45
      %s46 = sphi 0, %s43
      %s47 = sphi 0, %s46
      %s63 = sphi 0, %s47
      %s73 = sphi 0, %s75
      %s76 = sphi 0, %s73
      %s77 = sphi 0, %s76
      %s93 = sphi 0, %s77
      %s103 = sphi 0, %s105
      %s106 = sphi 0, %s103
      %s107 = sphi 0, %s106
      %s123 = sphi 0, %s107
      %s131 = sphi 0, %s133
      %s134 = sphi 0, %s131
      %s135 = sphi 0, %s134
      %s151 = sphi 0, %s135
    $region4: #{tpu_custom_call.1} parent=1 // loop_header_branch
      %17 = sbr.rel (%p15) target = $region8
    $region5: #{tpu_custom_call.1} parent=1 // loop_body
      %s19 = ssub.s32 %s14, 1
      %s20 = ssub.s32 %s14, 2
      %s30 = sadd.s32 1, %s23
      %p31 = scmp.ge.s32.totalorder %s30, 2
      %s32 = scalar_select %p31, 0, %s30
      %s33 = sadd.s32 1, %s22
      %s34 = scalar_select %p31, %s33, %s22
      %p35 = scmp.ge.s32.totalorder %s34, 1
      %s36 = scalar_select %p35, 0, %s34
      %s37 = sadd.s32 1, %s21
      %s38 = scalar_select %p35, %s37, %s21
      %p39 = scmp.ge.s32.totalorder %s38, 1
      %s40 = scalar_select %p39, 0, %s38
      %s41 = ssub.s32 %s22, %s36
      %p42 = scmp.eq.s32.totalorder %s41, 0
      %s44 = sadd.s32 %s43, 1
      %s45 = scalar_select %p42, %s43, %s44
      %p48 = pneg %p42
      %p49 = scmp.eq.s32.totalorder %s14, 1
      %p50 = por %p48, %p49
      %p51 = scmp.ne.s32.totalorder %s43, %s46
      %p52 = scmp.eq.s32.totalorder %s14, 0
      %p53 = por %p51, %p52
      %p54 = scmp.ne.s32.totalorder %s43, %s46
      %p55 = scmp.eq.s32.totalorder %s19, 1
      %p56 = por %p54, %p55
      %p57 = scmp.ne.s32.totalorder %s46, %s47
      %p58 = scmp.eq.s32.totalorder %s19, 0
      %p59 = por %p57, %p58
      %p60 = scmp.ne.s32.totalorder %s46, %s47
      %p61 = scmp.eq.s32.totalorder %s20, 1
      %p62 = por %p60, %p61
      %p64 = scmp.ne.s32.totalorder %s47, %s63
      %p65 = scmp.eq.s32.totalorder %s20, 0
      %p66 = por %p64, %p65
      %s67 = smul.u32 %s21, 2
      %s68 = sadd.s32 %s67, %s23
      %s69 = smul.u32 %s40, 2
      %s70 = sadd.s32 %s69, %s32
      %s71 = ssub.s32 %s68, %s70
      %p72 = scmp.eq.s32.totalorder %s71, 0
      %s74 = sadd.s32 %s73, 1
      %s75 = scalar_select %p72, %s73, %s74
      %p78 = pneg %p72
      %p79 = scmp.eq.s32.totalorder %s14, 1
      %p80 = por %p78, %p79
      %p81 = scmp.ne.s32.totalorder %s73, %s76
      %p82 = scmp.eq.s32.totalorder %s14, 0
      %p83 = por %p81, %p82
      %p84 = scmp.ne.s32.totalorder %s73, %s76
      %p85 = scmp.eq.s32.totalorder %s19, 1
      %p86 = por %p84, %p85
      %p87 = scmp.ne.s32.totalorder %s76, %s77
      %p88 = scmp.eq.s32.totalorder %s19, 0
      %p89 = por %p87, %p88
      %p90 = scmp.ne.s32.totalorder %s76, %s77
      %p91 = scmp.eq.s32.totalorder %s20, 1
      %p92 = por %p90, %p91
      %p94 = scmp.ne.s32.totalorder %s77, %s93
      %p95 = scmp.eq.s32.totalorder %s20, 0
      %p96 = por %p94, %p95
      %s97 = smul.u32 %s21, 2
      %s98 = sadd.s32 %s97, %s23
      %s99 = smul.u32 %s40, 2
      %s100 = sadd.s32 %s99, %s32
      %s101 = ssub.s32 %s98, %s100
      %p102 = scmp.eq.s32.totalorder %s101, 0
      %s104 = sadd.s32 %s103, 1
      %s105 = scalar_select %p102, %s103, %s104
      %p108 = pneg %p102
      %p109 = scmp.eq.s32.totalorder %s14, 1
      %p110 = por %p108, %p109
      %p111 = scmp.ne.s32.totalorder %s103, %s106
      %p112 = scmp.eq.s32.totalorder %s14, 0
      %p113 = por %p111, %p112
      %p114 = scmp.ne.s32.totalorder %s103, %s106
      %p115 = scmp.eq.s32.totalorder %s19, 1
      %p116 = por %p114, %p115
      %p117 = scmp.ne.s32.totalorder %s106, %s107
      %p118 = scmp.eq.s32.totalorder %s19, 0
      %p119 = por %p117, %p118
      %p120 = scmp.ne.s32.totalorder %s106, %s107
      %p121 = scmp.eq.s32.totalorder %s20, 1
      %p122 = por %p120, %p121
      %p124 = scmp.ne.s32.totalorder %s107, %s123
      %p125 = scmp.eq.s32.totalorder %s20, 0
      %p126 = por %p124, %p125
      %s127 = ssub.s32 %s21, %s40
      %s128 = ssub.s32 %s22, %s36
      %s129 = sor.u32 %s127, %s128
      %p130 = scmp.eq.s32.totalorder %s129, 0
      %s132 = sadd.s32 %s131, 1
      %s133 = scalar_select %p130, %s131, %s132
      %p136 = pneg %p130
      %p137 = scmp.eq.s32.totalorder %s14, 1
      %p138 = por %p136, %p137
      %p139 = scmp.ne.s32.totalorder %s131, %s134
      %p140 = scmp.eq.s32.totalorder %s14, 0
      %p141 = por %p139, %p140
      %p142 = scmp.ne.s32.totalorder %s131, %s134
      %p143 = scmp.eq.s32.totalorder %s19, 1
      %p144 = por %p142, %p143
      %p145 = scmp.ne.s32.totalorder %s134, %s135
      %p146 = scmp.eq.s32.totalorder %s19, 0
      %p147 = por %p145, %p146
      %p148 = scmp.ne.s32.totalorder %s134, %s135
      %p149 = scmp.eq.s32.totalorder %s20, 1
      %p150 = por %p148, %p149
      %p152 = scmp.ne.s32.totalorder %s135, %s151
      %p153 = scmp.eq.s32.totalorder %s20, 0
      %p154 = por %p152, %p153
      %p155 = scmp.le.s32.totalorder 1, %s14
      %p156 = scmp.lt.s32.totalorder %s14, 3
      %p157 = pnand %p155, %p156
      %p158 = pneg %p157
      // Predicated region
      $region9: #{tpu_custom_call.1} parent=5 // pred_check
        _
      $region10: #{tpu_custom_call.1} parent=5 // pred_check_branch
        %160 = sbr.rel (%p157) target = $region12
      $region11: #{tpu_custom_call.1} parent=5 // pred_region
        %s161 = ssub.s32 %s14, 1
        // Predicated region
        $region13: #{tpu_custom_call.1} parent=11 // pred_check
          %p162 = pneg %p59
        $region14: #{tpu_custom_call.1} parent=11 // pred_check_branch
          %164 = sbr.rel (%p162) target = $region16
        $region15: #{tpu_custom_call.1} parent=11 // pred_region
          %s165 = smul.u32 2, %s25
          %s167 = ssub.s32 256, 256
          %168 = vsyncadd [#allocation4], %s167
          %s169 = smul.addr %s165, 2
          %s170 = smul.addr %s169, 64
          %s171 = scalar_lea.hbm %s0, %s170
          %s172 = sshll.u32 [#allocation3], 4
          %s173 = int_to_ptr.vmem [resolvable:$true] %s172
          %178 = dma.hbm_to_vmem [thread:$0]  %s171, 256, %s173, [#allocation4], 128, 128, 8
        $region16: #{tpu_custom_call.1} parent=11 // pred_fallthru
          _
      $region12: #{tpu_custom_call.1} parent=5 // pred_fallthru
        _
      %p179 = scmp.lt.s32.totalorder %s14, 2
      // Predicated region
      $region17: #{tpu_custom_call.1} parent=5 // pred_check
        %p180 = pneg %p179
      $region18: #{tpu_custom_call.1} parent=5 // pred_check_branch
        %182 = sbr.rel (%p180) target = $region20
      $region19: #{tpu_custom_call.1} parent=5 // pred_region
        // Predicated region
        $region21: #{tpu_custom_call.1} parent=19 // pred_check
          %p183 = pneg %p83
        $region22: #{tpu_custom_call.1} parent=19 // pred_check_branch
          %185 = sbr.rel (%p183) target = $region24
        $region23: #{tpu_custom_call.1} parent=19 // pred_region
          %s186 = sand.u32 %s14, 1
          %s187 = scalar_lea.sflag [#allocation7], %s186
          %s188 = sand.u32 %s73, 1
          %s189 = smul.addr %s188, 512
          %s190 = scalar_lea.vmem [#allocation6], %s189
          %s191 = smul.u32 %s21, 2
          %s192 = sadd.s32 %s191, %s23
          %s193 = smul.u32 4, %s192
          %s195 = ssub.s32 8192, 8192
          %196 = vsyncadd %s187, %s195
          %s197 = smul.addr %s193, 64
          %s198 = scalar_lea.hbm %s1, %s197
          %s199 = sshll.u32 %s190, 4
          %s200 = int_to_ptr.vmem [resolvable:$true] %s199
          %205 = dma.hbm_to_vmem [thread:$0]  %s198, 8192, %s200, %s187, 512, 256, 16
        $region24: #{tpu_custom_call.1} parent=19 // pred_fallthru
          _
        // Predicated region
        $region25: #{tpu_custom_call.1} parent=19 // pred_check
          %p206 = pneg %p113
        $region26: #{tpu_custom_call.1} parent=19 // pred_check_branch
          %208 = sbr.rel (%p206) target = $region28
        $region27: #{tpu_custom_call.1} parent=19 // pred_region
          %s209 = sand.u32 %s14, 1
          %s210 = scalar_lea.sflag [#allocation7], %s209
          %s211 = sand.u32 %s103, 1
          %s212 = smul.addr %s211, 256
          %s213 = scalar_lea.vmem [#allocation8], %s212
          %s214 = smul.u32 %s21, 2
          %s215 = sadd.s32 %s214, %s23
          %s216 = smul.u32 32, %s215
          %s218 = ssub.s32 4096, 4096
          %219 = vsyncadd %s210, %s218
          %s220 = smul.addr %s216, 2
          %s221 = smul.addr %s220, 64
          %s222 = scalar_lea.hbm %s2, %s221
          %s223 = sshll.u32 %s213, 4
          %s224 = int_to_ptr.vmem [resolvable:$true] %s223
          %229 = dma.hbm_to_vmem [thread:$0]  %s222, 4096, %s224, %s210, 128, 128, 8
        $region28: #{tpu_custom_call.1} parent=19 // pred_fallthru
          _
      $region20: #{tpu_custom_call.1} parent=5 // pred_fallthru
        _
      %p230 = scmp.le.s32.totalorder 1, %s14
      %p231 = scmp.lt.s32.totalorder %s14, 3
      %p232 = pnand %p230, %p231
      %p233 = pneg %p232
      // Predicated region
      $region29: #{tpu_custom_call.1} parent=5 // pred_check
        _
      $region30: #{tpu_custom_call.1} parent=5 // pred_check_branch
        %235 = sbr.rel (%p232) target = $region32
      $region31: #{tpu_custom_call.1} parent=5 // pred_region
        %s236 = ssub.s32 %s14, 1
        // Predicated region
        $region33: #{tpu_custom_call.1} parent=31 // pred_check
          %p237 = pneg %p59
        $region34: #{tpu_custom_call.1} parent=31 // pred_check_branch
          %239 = sbr.rel (%p237) target = $region36
        $region35: #{tpu_custom_call.1} parent=31 // pred_region
          %240 = dma.done [#allocation4], 256
        $region36: #{tpu_custom_call.1} parent=31 // pred_fallthru
          _
        %s241 = sand.u32 %s19, 1
        %s242 = scalar_lea.sflag [#allocation7], %s241
        %s243 = sand.u32 %s76, 1
        %s244 = smul.addr %s243, 512
        %s245 = scalar_lea.vmem [#allocation6], %s244
        // Predicated region
        $region37: #{tpu_custom_call.1} parent=31 // pred_check
          %p246 = pneg %p89
        $region38: #{tpu_custom_call.1} parent=31 // pred_check_branch
          %248 = sbr.rel (%p246) target = $region40
        $region39: #{tpu_custom_call.1} parent=31 // pred_region
          %249 = dma.done %s242, 8192
        $region40: #{tpu_custom_call.1} parent=31 // pred_fallthru
          _
        %s250 = sand.u32 %s19, 1
        %s251 = scalar_lea.sflag [#allocation7], %s250
        %s252 = sand.u32 %s106, 1
        %s253 = smul.addr %s252, 256
        %s254 = scalar_lea.vmem [#allocation8], %s253
        // Predicated region
        $region41: #{tpu_custom_call.1} parent=31 // pred_check
          %p255 = pneg %p119
        $region42: #{tpu_custom_call.1} parent=31 // pred_check_branch
          %257 = sbr.rel (%p255) target = $region44
        $region43: #{tpu_custom_call.1} parent=31 // pred_region
          %258 = dma.done %s251, 4096
        $region44: #{tpu_custom_call.1} parent=31 // pred_fallthru
          _
        %p259 = pneg %p59
        %p260 = pneg %p56
        %s261 = sand.u32 %s19, 1
        %s262 = scalar_lea.sflag [#allocation7], %s261
        %s263 = sand.u32 %s76, 1
        %s264 = smul.addr %s263, 512
        %s265 = scalar_lea.vmem [#allocation6], %s264
        %p266 = pneg %p89
        %p267 = pneg %p86
        %s268 = sand.u32 %s19, 1
        %s269 = scalar_lea.sflag [#allocation7], %s268
        %s270 = sand.u32 %s106, 1
        %s271 = smul.addr %s270, 256
        %s272 = scalar_lea.vmem [#allocation8], %s271
        %p273 = pneg %p119
        %p274 = pneg %p116
        %p275 = pneg %p147
        %p276 = pneg %p144
        %s277 = smul.u32 2, %s25
        %s278 = smul.u32 %s24, 2
        %s279 = sadd.s32 %s278, %s26
        %s280 = smul.u32 4, %s279
        %s281 = smul.u32 %s24, 2
        %s282 = sadd.s32 %s281, %s26
        %s283 = smul.u32 32, %s282
        %s284 = smul.u32 2, %s25
        %p285 = scmp.eq.s32.totalorder %s26, 0
        // Predicated region
        $region45: #{tpu_custom_call.1} parent=31 // pred_check
          %p286 = pneg %p285
        $region46: #{tpu_custom_call.1} parent=31 // pred_check_branch
          %288 = sbr.rel (%p286) target = $region48
        $region47: #{tpu_custom_call.1} parent=31 // pred_region
          %289 = vst [vmem:[#allocation2] sm:$0xff] 0.0
          %290 = vst [vmem:[#allocation2 + $0x8] sm:$0xff] 0.0
          %291 = vst [vmem:[#allocation2 + $0x10] sm:$0xff] 0.0
          %292 = vst [vmem:[#allocation2 + $0x18] sm:$0xff] 0.0
        $region48: #{tpu_custom_call.1} parent=31 // pred_fallthru
          _
        %v293 = vld [vmem:[#allocation3] sm:$0xff]
        %v294 = vld [vmem:[#allocation3 + $0x8] sm:$0xff]
        %v295 = vld [vmem:[%s245] sm:$0xff]
        %v296 = vld [vmem:[%s245 + $0x8] sm:$0xff]
        %v297 = vld [vmem:[%s245 + $0x10] sm:$0xff]
        %v298 = vld [vmem:[%s245 + $0x18] sm:$0xff]
        %v299 = vld [vmem:[%s245 + $0x20] sm:$0xff]
        %v300 = vld [vmem:[%s245 + $0x28] sm:$0xff]
        %v301 = vld [vmem:[%s245 + $0x30] sm:$0xff]
        %v302 = vld [vmem:[%s245 + $0x38] sm:$0xff]
        %v303 = vld [vmem:[%s245 + $0x40] sm:$0xff]
        %v304 = vld [vmem:[%s245 + $0x48] sm:$0xff]
        %v305 = vld [vmem:[%s245 + $0x50] sm:$0xff]
        %v306 = vld [vmem:[%s245 + $0x58] sm:$0xff]
        %v307 = vld [vmem:[%s245 + $0x60] sm:$0xff]
        %v308 = vld [vmem:[%s245 + $0x68] sm:$0xff]
        %v309 = vld [vmem:[%s245 + $0x70] sm:$0xff]
        %v310 = vld [vmem:[%s245 + $0x78] sm:$0xff]
        %v311 = vld [vmem:[%s245 + $0x80] sm:$0xff]
        %v312 = vld [vmem:[%s245 + $0x88] sm:$0xff]
        %v313 = vld [vmem:[%s245 + $0x90] sm:$0xff]
        %v314 = vld [vmem:[%s245 + $0x98] sm:$0xff]
        %v315 = vld [vmem:[%s245 + $0xa0] sm:$0xff]
        %v316 = vld [vmem:[%s245 + $0xa8] sm:$0xff]
        %v317 = vld [vmem:[%s245 + $0xb0] sm:$0xff]
        %v318 = vld [vmem:[%s245 + $0xb8] sm:$0xff]
        %v319 = vld [vmem:[%s245 + $0xc0] sm:$0xff]
        %v320 = vld [vmem:[%s245 + $0xc8] sm:$0xff]
        %v321 = vld [vmem:[%s245 + $0xd0] sm:$0xff]
        %v322 = vld [vmem:[%s245 + $0xd8] sm:$0xff]
        %v323 = vld [vmem:[%s245 + $0xe0] sm:$0xff]
        %v324 = vld [vmem:[%s245 + $0xe8] sm:$0xff]
        %v325 = vld [vmem:[%s245 + $0xf0] sm:$0xff]
        %v326 = vld [vmem:[%s245 + $0xf8] sm:$0xff]
        %v327 = vld [vmem:[%s245 + $0x100] sm:$0xff]
        %v328 = vld [vmem:[%s245 + $0x108] sm:$0xff]
        %v329 = vld [vmem:[%s245 + $0x110] sm:$0xff]
        %v330 = vld [vmem:[%s245 + $0x118] sm:$0xff]
        %v331 = vld [vmem:[%s245 + $0x120] sm:$0xff]
        %v332 = vld [vmem:[%s245 + $0x128] sm:$0xff]
        %v333 = vld [vmem:[%s245 + $0x130] sm:$0xff]
        %v334 = vld [vmem:[%s245 + $0x138] sm:$0xff]
        %v335 = vld [vmem:[%s245 + $0x140] sm:$0xff]
        %v336 = vld [vmem:[%s245 + $0x148] sm:$0xff]
        %v337 = vld [vmem:[%s245 + $0x150] sm:$0xff]
        %v338 = vld [vmem:[%s245 + $0x158] sm:$0xff]
        %v339 = vld [vmem:[%s245 + $0x160] sm:$0xff]
        %v340 = vld [vmem:[%s245 + $0x168] sm:$0xff]
        %v341 = vld [vmem:[%s245 + $0x170] sm:$0xff]
        %v342 = vld [vmem:[%s245 + $0x178] sm:$0xff]
        %v343 = vld [vmem:[%s245 + $0x180] sm:$0xff]
        %v344 = vld [vmem:[%s245 + $0x188] sm:$0xff]
        %v345 = vld [vmem:[%s245 + $0x190] sm:$0xff]
        %v346 = vld [vmem:[%s245 + $0x198] sm:$0xff]
        %v347 = vld [vmem:[%s245 + $0x1a0] sm:$0xff]
        %v348 = vld [vmem:[%s245 + $0x1a8] sm:$0xff]
        %v349 = vld [vmem:[%s245 + $0x1b0] sm:$0xff]
        %v350 = vld [vmem:[%s245 + $0x1b8] sm:$0xff]
        %v351 = vld [vmem:[%s245 + $0x1c0] sm:$0xff]
        %v352 = vld [vmem:[%s245 + $0x1c8] sm:$0xff]
        %v353 = vld [vmem:[%s245 + $0x1d0] sm:$0xff]
        %v354 = vld [vmem:[%s245 + $0x1d8] sm:$0xff]
        %v355 = vld [vmem:[%s245 + $0x1e0] sm:$0xff]
        %v356 = vld [vmem:[%s245 + $0x1e8] sm:$0xff]
        %v357 = vld [vmem:[%s245 + $0x1f0] sm:$0xff]
        %v358 = vld [vmem:[%s245 + $0x1f8] sm:$0xff]
        %v361 = vunpack.c.l.b16 %v293
        %v362 = vunpack.c.h.b16 %v293
        %v363 = vunpack.c.l.b16 %v294
        %v364 = vunpack.c.h.b16 %v294
        %v365 = vpack.c.b16 %v363, %v361
        %v366 = vpack.c.b16 %v364, %v362
        %v433 = vunpack.c.l.b16 %v295
        %v434 = vunpack.c.h.b16 %v295
        %v435 = vunpack.c.l.b16 %v296
        %v436 = vunpack.c.h.b16 %v296
        %v437 = vunpack.c.l.b16 %v297
        %v438 = vunpack.c.h.b16 %v297
        %v439 = vunpack.c.l.b16 %v298
        %v440 = vunpack.c.h.b16 %v298
        %v441 = vunpack.c.l.b16 %v299
        %v442 = vunpack.c.h.b16 %v299
        %v443 = vunpack.c.l.b16 %v300
        %v444 = vunpack.c.h.b16 %v300
        %v445 = vunpack.c.l.b16 %v301
        %v446 = vunpack.c.h.b16 %v301
        %v447 = vunpack.c.l.b16 %v302
        %v448 = vunpack.c.h.b16 %v302
        %v449 = vunpack.c.l.b16 %v303
        %v450 = vunpack.c.h.b16 %v303
        %v451 = vunpack.c.l.b16 %v304
        %v452 = vunpack.c.h.b16 %v304
        %v453 = vunpack.c.l.b16 %v305
        %v454 = vunpack.c.h.b16 %v305
        %v455 = vunpack.c.l.b16 %v306
        %v456 = vunpack.c.h.b16 %v306
        %v457 = vunpack.c.l.b16 %v307
        %v458 = vunpack.c.h.b16 %v307
        %v459 = vunpack.c.l.b16 %v308
        %v460 = vunpack.c.h.b16 %v308
        %v461 = vunpack.c.l.b16 %v309
        %v462 = vunpack.c.h.b16 %v309
        %v463 = vunpack.c.l.b16 %v310
        %v464 = vunpack.c.h.b16 %v310
        %v465 = vunpack.c.l.b16 %v311
        %v466 = vunpack.c.h.b16 %v311
        %v467 = vunpack.c.l.b16 %v312
        %v468 = vunpack.c.h.b16 %v312
        %v469 = vunpack.c.l.b16 %v313
        %v470 = vunpack.c.h.b16 %v313
        %v471 = vunpack.c.l.b16 %v314
        %v472 = vunpack.c.h.b16 %v314
        %v473 = vunpack.c.l.b16 %v315
        %v474 = vunpack.c.h.b16 %v315
        %v475 = vunpack.c.l.b16 %v316
        %v476 = vunpack.c.h.b16 %v316
        %v477 = vunpack.c.l.b16 %v317
        %v478 = vunpack.c.h.b16 %v317
        %v479 = vunpack.c.l.b16 %v318
        %v480 = vunpack.c.h.b16 %v318
        %v481 = vunpack.c.l.b16 %v319
        %v482 = vunpack.c.h.b16 %v319
        %v483 = vunpack.c.l.b16 %v320
        %v484 = vunpack.c.h.b16 %v320
        %v485 = vunpack.c.l.b16 %v321
        %v486 = vunpack.c.h.b16 %v321
        %v487 = vunpack.c.l.b16 %v322
        %v488 = vunpack.c.h.b16 %v322
        %v489 = vunpack.c.l.b16 %v323
        %v490 = vunpack.c.h.b16 %v323
        %v491 = vunpack.c.l.b16 %v324
        %v492 = vunpack.c.h.b16 %v324
        %v493 = vunpack.c.l.b16 %v325
        %v494 = vunpack.c.h.b16 %v325
        %v495 = vunpack.c.l.b16 %v326
        %v496 = vunpack.c.h.b16 %v326
        %v497 = vunpack.c.l.b16 %v327
        %v498 = vunpack.c.h.b16 %v327
        %v499 = vunpack.c.l.b16 %v328
        %v500 = vunpack.c.h.b16 %v328
        %v501 = vunpack.c.l.b16 %v329
        %v502 = vunpack.c.h.b16 %v329
        %v503 = vunpack.c.l.b16 %v330
        %v504 = vunpack.c.h.b16 %v330
        %v505 = vunpack.c.l.b16 %v331
        %v506 = vunpack.c.h.b16 %v331
        %v507 = vunpack.c.l.b16 %v332
        %v508 = vunpack.c.h.b16 %v332
        %v509 = vunpack.c.l.b16 %v333
        %v510 = vunpack.c.h.b16 %v333
        %v511 = vunpack.c.l.b16 %v334
        %v512 = vunpack.c.h.b16 %v334
        %v513 = vunpack.c.l.b16 %v335
        %v514 = vunpack.c.h.b16 %v335
        %v515 = vunpack.c.l.b16 %v336
        %v516 = vunpack.c.h.b16 %v336
        %v517 = vunpack.c.l.b16 %v337
        %v518 = vunpack.c.h.b16 %v337
        %v519 = vunpack.c.l.b16 %v338
        %v520 = vunpack.c.h.b16 %v338
        %v521 = vunpack.c.l.b16 %v339
        %v522 = vunpack.c.h.b16 %v339
        %v523 = vunpack.c.l.b16 %v340
        %v524 = vunpack.c.h.b16 %v340
        %v525 = vunpack.c.l.b16 %v341
        %v526 = vunpack.c.h.b16 %v341
        %v527 = vunpack.c.l.b16 %v342
        %v528 = vunpack.c.h.b16 %v342
        %v529 = vunpack.c.l.b16 %v343
        %v530 = vunpack.c.h.b16 %v343
        %v531 = vunpack.c.l.b16 %v344
        %v532 = vunpack.c.h.b16 %v344
        %v533 = vunpack.c.l.b16 %v345
        %v534 = vunpack.c.h.b16 %v345
        %v535 = vunpack.c.l.b16 %v346
        %v536 = vunpack.c.h.b16 %v346
        %v537 = vunpack.c.l.b16 %v347
        %v538 = vunpack.c.h.b16 %v347
        %v539 = vunpack.c.l.b16 %v348
        %v540 = vunpack.c.h.b16 %v348
        %v541 = vunpack.c.l.b16 %v349
        %v542 = vunpack.c.h.b16 %v349
        %v543 = vunpack.c.l.b16 %v350
        %v544 = vunpack.c.h.b16 %v350
        %v545 = vunpack.c.l.b16 %v351
        %v546 = vunpack.c.h.b16 %v351
        %v547 = vunpack.c.l.b16 %v352
        %v548 = vunpack.c.h.b16 %v352
        %v549 = vunpack.c.l.b16 %v353
        %v550 = vunpack.c.h.b16 %v353
        %v551 = vunpack.c.l.b16 %v354
        %v552 = vunpack.c.h.b16 %v354
        %v553 = vunpack.c.l.b16 %v355
        %v554 = vunpack.c.h.b16 %v355
        %v555 = vunpack.c.l.b16 %v356
        %v556 = vunpack.c.h.b16 %v356
        %v557 = vunpack.c.l.b16 %v357
        %v558 = vunpack.c.h.b16 %v357
        %v559 = vunpack.c.l.b16 %v358
        %v560 = vunpack.c.h.b16 %v358
        %v561 = vpack.c.b16 %v437, %v433
        %v562 = vpack.c.b16 %v438, %v434
        %v563 = vpack.c.b16 %v439, %v435
        %v564 = vpack.c.b16 %v440, %v436
        %v565 = vpack.c.b16 %v445, %v441
        %v566 = vpack.c.b16 %v446, %v442
        %v567 = vpack.c.b16 %v447, %v443
        %v568 = vpack.c.b16 %v448, %v444
        %v569 = vpack.c.b16 %v453, %v449
        %v570 = vpack.c.b16 %v454, %v450
        %v571 = vpack.c.b16 %v455, %v451
        %v572 = vpack.c.b16 %v456, %v452
        %v573 = vpack.c.b16 %v461, %v457
        %v574 = vpack.c.b16 %v462, %v458
        %v575 = vpack.c.b16 %v463, %v459
        %v576 = vpack.c.b16 %v464, %v460
        %v577 = vpack.c.b16 %v469, %v465
        %v578 = vpack.c.b16 %v470, %v466
        %v579 = vpack.c.b16 %v471, %v467
        %v580 = vpack.c.b16 %v472, %v468
        %v581 = vpack.c.b16 %v477, %v473
        %v582 = vpack.c.b16 %v478, %v474
        %v583 = vpack.c.b16 %v479, %v475
        %v584 = vpack.c.b16 %v480, %v476
        %v585 = vpack.c.b16 %v485, %v481
        %v586 = vpack.c.b16 %v486, %v482
        %v587 = vpack.c.b16 %v487, %v483
        %v588 = vpack.c.b16 %v488, %v484
        %v589 = vpack.c.b16 %v493, %v489
        %v590 = vpack.c.b16 %v494, %v490
        %v591 = vpack.c.b16 %v495, %v491
        %v592 = vpack.c.b16 %v496, %v492
        %v593 = vpack.c.b16 %v501, %v497
        %v594 = vpack.c.b16 %v502, %v498
        %v595 = vpack.c.b16 %v503, %v499
        %v596 = vpack.c.b16 %v504, %v500
        %v597 = vpack.c.b16 %v509, %v505
        %v598 = vpack.c.b16 %v510, %v506
        %v599 = vpack.c.b16 %v511, %v507
        %v600 = vpack.c.b16 %v512, %v508
        %v601 = vpack.c.b16 %v517, %v513
        %v602 = vpack.c.b16 %v518, %v514
        %v603 = vpack.c.b16 %v519, %v515
        %v604 = vpack.c.b16 %v520, %v516
        %v605 = vpack.c.b16 %v525, %v521
        %v606 = vpack.c.b16 %v526, %v522
        %v607 = vpack.c.b16 %v527, %v523
        %v608 = vpack.c.b16 %v528, %v524
        %v609 = vpack.c.b16 %v533, %v529
        %v610 = vpack.c.b16 %v534, %v530
        %v611 = vpack.c.b16 %v535, %v531
        %v612 = vpack.c.b16 %v536, %v532
        %v613 = vpack.c.b16 %v541, %v537
        %v614 = vpack.c.b16 %v542, %v538
        %v615 = vpack.c.b16 %v543, %v539
        %v616 = vpack.c.b16 %v544, %v540
        %v617 = vpack.c.b16 %v549, %v545
        %v618 = vpack.c.b16 %v550, %v546
        %v619 = vpack.c.b16 %v551, %v547
        %v620 = vpack.c.b16 %v552, %v548
        %v621 = vpack.c.b16 %v557, %v553
        %v622 = vpack.c.b16 %v558, %v554
        %v623 = vpack.c.b16 %v559, %v555
        %v624 = vpack.c.b16 %v560, %v556
        %689 = vmatprep.subr.bf16.mxu0 %v562
        %690 = vmatpush1.bf16.msra.mxu0 %v561
        %691 = vmatprep.subr.bf16.mxu0 %v566
        %692 = vmatpush1.bf16.msra.mxu0 %v565
        %693 = vmatprep.subr.bf16.mxu0 %v570
        %694 = vmatpush1.bf16.msra.mxu0 %v569
        %695 = vmatprep.subr.bf16.mxu0 %v574
        %696 = vmatpush1.bf16.msra.mxu0 %v573
        %697 = vmatprep.subr.bf16.mxu0 %v578
        %698 = vmatpush1.bf16.msra.mxu0 %v577
        %699 = vmatprep.subr.bf16.mxu0 %v582
        %700 = vmatpush1.bf16.msra.mxu0 %v581
        %701 = vmatprep.subr.bf16.mxu0 %v586
        %702 = vmatpush1.bf16.msra.mxu0 %v585
        %703 = vmatprep.subr.bf16.mxu0 %v590
        %704 = vmatpush1.bf16.msra.mxu0 %v589
        %705 = vmatprep.subr.bf16.mxu0 %v594
        %706 = vmatpush1.bf16.msra.mxu0 %v593
        %707 = vmatprep.subr.bf16.mxu0 %v598
        %708 = vmatpush1.bf16.msra.mxu0 %v597
        %709 = vmatprep.subr.bf16.mxu0 %v602
        %710 = vmatpush1.bf16.msra.mxu0 %v601
        %711 = vmatprep.subr.bf16.mxu0 %v606
        %712 = vmatpush1.bf16.msra.mxu0 %v605
        %713 = vmatprep.subr.bf16.mxu0 %v610
        %714 = vmatpush1.bf16.msra.mxu0 %v609
        %715 = vmatprep.subr.bf16.mxu0 %v614
        %716 = vmatpush1.bf16.msra.mxu0 %v613
        %717 = vmatprep.subr.bf16.mxu0 %v618
        %718 = vmatpush1.bf16.msra.mxu0 %v617
        %719 = vmatprep.subr.bf16.mxu0 %v622
        %720 = vmatpush1.bf16.msra.mxu0 %v621
        %721 = vmatprep.mubr.bf16.mxu0 %v366
        %722 = vmatmul.mubr.bf16.gmra.mrb[0].mxu0 %v365
        %v723 = vpop.f32.mrb[0].mxu0
        %v724 = vadd.f32 0.0, %v723
        %v725 = vpop.f32.mrb[0].mxu0
        %v726 = vadd.f32 0.0, %v725
        %v727 = vpop.f32.mrb[0].mxu0
        %v728 = vadd.f32 0.0, %v727
        %v729 = vpop.f32.mrb[0].mxu0
        %v730 = vadd.f32 0.0, %v729
        %731 = vdwg.mxu0
        %732 = vmatprep.subr.bf16.mxu0 %v564
        %733 = vmatpush1.bf16.msra.mxu0 %v563
        %734 = vmatprep.subr.bf16.mxu0 %v568
        %735 = vmatpush1.bf16.msra.mxu0 %v567
        %736 = vmatprep.subr.bf16.mxu0 %v572
        %737 = vmatpush1.bf16.msra.mxu0 %v571
        %738 = vmatprep.subr.bf16.mxu0 %v576
        %739 = vmatpush1.bf16.msra.mxu0 %v575
        %740 = vmatprep.subr.bf16.mxu0 %v580
        %741 = vmatpush1.bf16.msra.mxu0 %v579
        %742 = vmatprep.subr.bf16.mxu0 %v584
        %743 = vmatpush1.bf16.msra.mxu0 %v583
        %744 = vmatprep.subr.bf16.mxu0 %v588
        %745 = vmatpush1.bf16.msra.mxu0 %v587
        %746 = vmatprep.subr.bf16.mxu0 %v592
        %747 = vmatpush1.bf16.msra.mxu0 %v591
        %748 = vmatprep.subr.bf16.mxu0 %v596
        %749 = vmatpush1.bf16.msra.mxu0 %v595
        %750 = vmatprep.subr.bf16.mxu0 %v600
        %751 = vmatpush1.bf16.msra.mxu0 %v599
        %752 = vmatprep.subr.bf16.mxu0 %v604
        %753 = vmatpush1.bf16.msra.mxu0 %v603
        %754 = vmatprep.subr.bf16.mxu0 %v608
        %755 = vmatpush1.bf16.msra.mxu0 %v607
        %756 = vmatprep.subr.bf16.mxu0 %v612
        %757 = vmatpush1.bf16.msra.mxu0 %v611
        %758 = vmatprep.subr.bf16.mxu0 %v616
        %759 = vmatpush1.bf16.msra.mxu0 %v615
        %760 = vmatprep.subr.bf16.mxu0 %v620
        %761 = vmatpush1.bf16.msra.mxu0 %v619
        %762 = vmatprep.subr.bf16.mxu0 %v624
        %763 = vmatpush1.bf16.msra.mxu0 %v623
        %764 = vmatprep.mubr.bf16.mxu0 %v366
        %765 = vmatmul.mubr.bf16.gmra.mrb[0].mxu0 %v365
        %v766 = vpop.f32.mrb[0].mxu0
        %v767 = vadd.f32 0.0, %v766
        %v768 = vpop.f32.mrb[0].mxu0
        %v769 = vadd.f32 0.0, %v768
        %v770 = vpop.f32.mrb[0].mxu0
        %v771 = vadd.f32 0.0, %v770
        %v772 = vpop.f32.mrb[0].mxu0
        %v773 = vadd.f32 0.0, %v772
        %774 = vdwg.mxu0
        %v775 = vxor.u32 %v724, 2147483648
        %v776 = vxor.u32 %v726, 2147483648
        %v777 = vxor.u32 %v728, 2147483648
        %v778 = vxor.u32 %v730, 2147483648
        %v779 = vmul.f32 %v775, 1.442695
        %v780 = vpow.pop %v779
        %v781 = vmul.f32 %v776, 1.442695
        %v782 = vpow.pop %v781
        %v783 = vmul.f32 %v777, 1.442695
        %v784 = vpow.pop %v783
        %v785 = vmul.f32 %v778, 1.442695
        %v786 = vpow.pop %v785
        %v787 = vadd.f32 %v780, 1.0
        %v788 = vadd.f32 %v782, 1.0
        %v789 = vadd.f32 %v784, 1.0
        %v790 = vadd.f32 %v786, 1.0
        %v791 = vrcp.pop %v787
        %v792 = vmul.f32 1.0, %v791
        %v793 = vrcp.pop %v788
        %v794 = vmul.f32 1.0, %v793
        %v795 = vrcp.pop %v789
        %v796 = vmul.f32 1.0, %v795
        %v797 = vrcp.pop %v790
        %v798 = vmul.f32 1.0, %v797
        %v799 = vmul.f32 %v724, %v792
        %v800 = vmul.f32 %v726, %v794
        %v801 = vmul.f32 %v728, %v796
        %v802 = vmul.f32 %v730, %v798
        %v803 = vmul.f32 %v799, %v767
        %v804 = vmul.f32 %v800, %v769
        %v805 = vmul.f32 %v801, %v771
        %v806 = vmul.f32 %v802, %v773
        %v807 = vld [vmem:[#allocation2] sm:$0xff]
        %v808 = vld [vmem:[#allocation2 + $0x8] sm:$0xff]
        %v809 = vld [vmem:[#allocation2 + $0x10] sm:$0xff]
        %v810 = vld [vmem:[#allocation2 + $0x18] sm:$0xff]
        %v811 = vpack.c.bf16 %v805, %v803
        %v812 = vpack.c.bf16 %v806, %v804
        %v813 = vld [vmem:[%s254] sm:$0xff]
        %v814 = vld [vmem:[%s254 + $0x8] sm:$0xff]
        %v815 = vld [vmem:[%s254 + $0x10] sm:$0xff]
        %v816 = vld [vmem:[%s254 + $0x18] sm:$0xff]
        %v817 = vld [vmem:[%s254 + $0x20] sm:$0xff]
        %v818 = vld [vmem:[%s254 + $0x28] sm:$0xff]
        %v819 = vld [vmem:[%s254 + $0x30] sm:$0xff]
        %v820 = vld [vmem:[%s254 + $0x38] sm:$0xff]
        %v821 = vld [vmem:[%s254 + $0x40] sm:$0xff]
        %v822 = vld [vmem:[%s254 + $0x48] sm:$0xff]
        %v823 = vld [vmem:[%s254 + $0x50] sm:$0xff]
        %v824 = vld [vmem:[%s254 + $0x58] sm:$0xff]
        %v825 = vld [vmem:[%s254 + $0x60] sm:$0xff]
        %v826 = vld [vmem:[%s254 + $0x68] sm:$0xff]
        %v827 = vld [vmem:[%s254 + $0x70] sm:$0xff]
        %v828 = vld [vmem:[%s254 + $0x78] sm:$0xff]
        %v829 = vld [vmem:[%s254 + $0x80] sm:$0xff]
        %v830 = vld [vmem:[%s254 + $0x88] sm:$0xff]
        %v831 = vld [vmem:[%s254 + $0x90] sm:$0xff]
        %v832 = vld [vmem:[%s254 + $0x98] sm:$0xff]
        %v833 = vld [vmem:[%s254 + $0xa0] sm:$0xff]
        %v834 = vld [vmem:[%s254 + $0xa8] sm:$0xff]
        %v835 = vld [vmem:[%s254 + $0xb0] sm:$0xff]
        %v836 = vld [vmem:[%s254 + $0xb8] sm:$0xff]
        %v837 = vld [vmem:[%s254 + $0xc0] sm:$0xff]
        %v838 = vld [vmem:[%s254 + $0xc8] sm:$0xff]
        %v839 = vld [vmem:[%s254 + $0xd0] sm:$0xff]
        %v840 = vld [vmem:[%s254 + $0xd8] sm:$0xff]
        %v841 = vld [vmem:[%s254 + $0xe0] sm:$0xff]
        %v842 = vld [vmem:[%s254 + $0xe8] sm:$0xff]
        %v843 = vld [vmem:[%s254 + $0xf0] sm:$0xff]
        %v844 = vld [vmem:[%s254 + $0xf8] sm:$0xff]
        %v877 = vunpack.c.l.b16 %v813
        %v878 = vunpack.c.h.b16 %v813
        %v879 = vunpack.c.l.b16 %v814
        %v880 = vunpack.c.h.b16 %v814
        %v881 = vunpack.c.l.b16 %v815
        %v882 = vunpack.c.h.b16 %v815
        %v883 = vunpack.c.l.b16 %v816
        %v884 = vunpack.c.h.b16 %v816
        %v885 = vunpack.c.l.b16 %v817
        %v886 = vunpack.c.h.b16 %v817
        %v887 = vunpack.c.l.b16 %v818
        %v888 = vunpack.c.h.b16 %v818
        %v889 = vunpack.c.l.b16 %v819
        %v890 = vunpack.c.h.b16 %v819
        %v891 = vunpack.c.l.b16 %v820
        %v892 = vunpack.c.h.b16 %v820
        %v893 = vunpack.c.l.b16 %v821
        %v894 = vunpack.c.h.b16 %v821
        %v895 = vunpack.c.l.b16 %v822
        %v896 = vunpack.c.h.b16 %v822
        %v897 = vunpack.c.l.b16 %v823
        %v898 = vunpack.c.h.b16 %v823
        %v899 = vunpack.c.l.b16 %v824
        %v900 = vunpack.c.h.b16 %v824
        %v901 = vunpack.c.l.b16 %v825
        %v902 = vunpack.c.h.b16 %v825
        %v903 = vunpack.c.l.b16 %v826
        %v904 = vunpack.c.h.b16 %v826
        %v905 = vunpack.c.l.b16 %v827
        %v906 = vunpack.c.h.b16 %v827
        %v907 = vunpack.c.l.b16 %v828
        %v908 = vunpack.c.h.b16 %v828
        %v909 = vunpack.c.l.b16 %v829
        %v910 = vunpack.c.h.b16 %v829
        %v911 = vunpack.c.l.b16 %v830
        %v912 = vunpack.c.h.b16 %v830
        %v913 = vunpack.c.l.b16 %v831
        %v914 = vunpack.c.h.b16 %v831
        %v915 = vunpack.c.l.b16 %v832
        %v916 = vunpack.c.h.b16 %v832
        %v917 = vunpack.c.l.b16 %v833
        %v918 = vunpack.c.h.b16 %v833
        %v919 = vunpack.c.l.b16 %v834
        %v920 = vunpack.c.h.b16 %v834
        %v921 = vunpack.c.l.b16 %v835
        %v922 = vunpack.c.h.b16 %v835
        %v923 = vunpack.c.l.b16 %v836
        %v924 = vunpack.c.h.b16 %v836
        %v925 = vunpack.c.l.b16 %v837
        %v926 = vunpack.c.h.b16 %v837
        %v927 = vunpack.c.l.b16 %v838
        %v928 = vunpack.c.h.b16 %v838
        %v929 = vunpack.c.l.b16 %v839
        %v930 = vunpack.c.h.b16 %v839
        %v931 = vunpack.c.l.b16 %v840
        %v932 = vunpack.c.h.b16 %v840
        %v933 = vunpack.c.l.b16 %v841
        %v934 = vunpack.c.h.b16 %v841
        %v935 = vunpack.c.l.b16 %v842
        %v936 = vunpack.c.h.b16 %v842
        %v937 = vunpack.c.l.b16 %v843
        %v938 = vunpack.c.h.b16 %v843
        %v939 = vunpack.c.l.b16 %v844
        %v940 = vunpack.c.h.b16 %v844
        %v941 = vpack.c.b16 %v879, %v877
        %v942 = vpack.c.b16 %v880, %v878
        %v943 = vpack.c.b16 %v883, %v881
        %v944 = vpack.c.b16 %v884, %v882
        %v945 = vpack.c.b16 %v887, %v885
        %v946 = vpack.c.b16 %v888, %v886
        %v947 = vpack.c.b16 %v891, %v889
        %v948 = vpack.c.b16 %v892, %v890
        %v949 = vpack.c.b16 %v895, %v893
        %v950 = vpack.c.b16 %v896, %v894
        %v951 = vpack.c.b16 %v899, %v897
        %v952 = vpack.c.b16 %v900, %v898
        %v953 = vpack.c.b16 %v903, %v901
        %v954 = vpack.c.b16 %v904, %v902
        %v955 = vpack.c.b16 %v907, %v905
        %v956 = vpack.c.b16 %v908, %v906
        %v957 = vpack.c.b16 %v911, %v909
        %v958 = vpack.c.b16 %v912, %v910
        %v959 = vpack.c.b16 %v915, %v913
        %v960 = vpack.c.b16 %v916, %v914
        %v961 = vpack.c.b16 %v919, %v917
        %v962 = vpack.c.b16 %v920, %v918
        %v963 = vpack.c.b16 %v923, %v921
        %v964 = vpack.c.b16 %v924, %v922
        %v965 = vpack.c.b16 %v927, %v925
        %v966 = vpack.c.b16 %v928, %v926
        %v967 = vpack.c.b16 %v931, %v929
        %v968 = vpack.c.b16 %v932, %v930
        %v969 = vpack.c.b16 %v935, %v933
        %v970 = vpack.c.b16 %v936, %v934
        %v971 = vpack.c.b16 %v939, %v937
        %v972 = vpack.c.b16 %v940, %v938
        %1005 = vmatprep.subr.bf16.mxu0 %v942
        %1006 = vmatpush1.bf16.msra.mxu0 %v941
        %1007 = vmatprep.subr.bf16.mxu0 %v944
        %1008 = vmatpush1.bf16.msra.mxu0 %v943
        %1009 = vmatprep.subr.bf16.mxu0 %v946
        %1010 = vmatpush1.bf16.msra.mxu0 %v945
        %1011 = vmatprep.subr.bf16.mxu0 %v948
        %1012 = vmatpush1.bf16.msra.mxu0 %v947
        %1013 = vmatprep.subr.bf16.mxu0 %v950
        %1014 = vmatpush1.bf16.msra.mxu0 %v949
        %1015 = vmatprep.subr.bf16.mxu0 %v952
        %1016 = vmatpush1.bf16.msra.mxu0 %v951
        %1017 = vmatprep.subr.bf16.mxu0 %v954
        %1018 = vmatpush1.bf16.msra.mxu0 %v953
        %1019 = vmatprep.subr.bf16.mxu0 %v956
        %1020 = vmatpush1.bf16.msra.mxu0 %v955
        %1021 = vmatprep.subr.bf16.mxu0 %v958
        %1022 = vmatpush1.bf16.msra.mxu0 %v957
        %1023 = vmatprep.subr.bf16.mxu0 %v960
        %1024 = vmatpush1.bf16.msra.mxu0 %v959
        %1025 = vmatprep.subr.bf16.mxu0 %v962
        %1026 = vmatpush1.bf16.msra.mxu0 %v961
        %1027 = vmatprep.subr.bf16.mxu0 %v964
        %1028 = vmatpush1.bf16.msra.mxu0 %v963
        %1029 = vmatprep.subr.bf16.mxu0 %v966
        %1030 = vmatpush1.bf16.msra.mxu0 %v965
        %1031 = vmatprep.subr.bf16.mxu0 %v968
        %1032 = vmatpush1.bf16.msra.mxu0 %v967
        %1033 = vmatprep.subr.bf16.mxu0 %v970
        %1034 = vmatpush1.bf16.msra.mxu0 %v969
        %1035 = vmatprep.subr.bf16.mxu0 %v972
        %1036 = vmatpush1.bf16.msra.mxu0 %v971
        %1037 = vmatprep.mubr.bf16.mxu0 %v812
        %1038 = vmatmul.mubr.bf16.gmra.mrb[0].mxu0 %v811
        %v1039 = vpop.f32.mrb[0].mxu0
        %v1040 = vadd.f32 0.0, %v1039
        %v1041 = vpop.f32.mrb[0].mxu0
        %v1042 = vadd.f32 0.0, %v1041
        %v1043 = vpop.f32.mrb[0].mxu0
        %v1044 = vadd.f32 0.0, %v1043
        %v1045 = vpop.f32.mrb[0].mxu0
        %v1046 = vadd.f32 0.0, %v1045
        %1047 = vdwg.mxu0
        %v1048 = vadd.f32 %v807, %v1040
        %v1049 = vadd.f32 %v808, %v1042
        %v1050 = vadd.f32 %v809, %v1044
        %v1051 = vadd.f32 %v810, %v1046
        %1052 = vst [vmem:[#allocation2] sm:$0xff] %v1048
        %1053 = vst [vmem:[#allocation2 + $0x8] sm:$0xff] %v1049
        %1054 = vst [vmem:[#allocation2 + $0x10] sm:$0xff] %v1050
        %1055 = vst [vmem:[#allocation2 + $0x18] sm:$0xff] %v1051
        %p1056 = scmp.eq.s32.totalorder %s26, 1
        // Predicated region
        $region49: #{tpu_custom_call.1} parent=31 // pred_check
          %p1057 = pneg %p1056
        $region50: #{tpu_custom_call.1} parent=31 // pred_check_branch
          %1059 = sbr.rel (%p1057) target = $region52
        $region51: #{tpu_custom_call.1} parent=31 // pred_region
          %v1060 = vld [vmem:[#allocation2] sm:$0xff]
          %v1061 = vld [vmem:[#allocation2 + $0x8] sm:$0xff]
          %v1062 = vld [vmem:[#allocation2 + $0x10] sm:$0xff]
          %v1063 = vld [vmem:[#allocation2 + $0x18] sm:$0xff]
          %1064 = vst [vmem:[#allocation9] sm:$0xff] %v1060
          %1065 = vst [vmem:[#allocation9 + $0x8] sm:$0xff] %v1061
          %1066 = vst [vmem:[#allocation9 + $0x10] sm:$0xff] %v1062
          %1067 = vst [vmem:[#allocation9 + $0x18] sm:$0xff] %v1063
        $region52: #{tpu_custom_call.1} parent=31 // pred_fallthru
          _
        // Predicated region
        $region53: #{tpu_custom_call.1} parent=31 // pred_check
          %p1068 = pneg %p144
        $region54: #{tpu_custom_call.1} parent=31 // pred_check_branch
          %1070 = sbr.rel (%p1068) target = $region56
        $region55: #{tpu_custom_call.1} parent=31 // pred_region
          %s1071 = smul.u32 2, %s25
          %s1073 = ssub.s32 512, 512
          %1074 = vsyncadd [#allocation5], %s1073
          %s1075 = smul.addr %s1071, 2
          %s1076 = smul.addr %s24, 4
          %s1077 = sadd.s32 %s1075, %s1076
          %s1078 = smul.addr %s1077, 128
          %s1079 = scalar_lea.hbm %s3, %s1078
          %s1080 = sshll.u32 [#allocation9], 4
          %s1081 = int_to_ptr.vmem [resolvable:$true] %s1080
          %1086 = dma.vmem_to_hbm [thread:$0]  %s1081, 512, %s1079, [#allocation5], 256, 256, 16
        $region56: #{tpu_custom_call.1} parent=31 // pred_fallthru
          _
        // Predicated region
        $region57: #{tpu_custom_call.1} parent=31 // pred_check
          %p1087 = pneg %p144
        $region58: #{tpu_custom_call.1} parent=31 // pred_check_branch
          %1089 = sbr.rel (%p1087) target = $region60
        $region59: #{tpu_custom_call.1} parent=31 // pred_region
          %1090 = dma.done [#allocation5], 512
        $region60: #{tpu_custom_call.1} parent=31 // pred_fallthru
          _
      $region32: #{tpu_custom_call.1} parent=5 // pred_fallthru
        _
      %p1091 = scmp.le.s32.totalorder 2, %s14
      // Predicated region
      $region61: #{tpu_custom_call.1} parent=5 // pred_check
        %p1092 = pneg %p1091
      $region62: #{tpu_custom_call.1} parent=5 // pred_check_branch
        %1094 = sbr.rel (%p1092) target = $region64
      $region63: #{tpu_custom_call.1} parent=5 // pred_region
        %s1095 = ssub.s32 %s14, 2
      $region64: #{tpu_custom_call.1} parent=5 // pred_fallthru
        _
    $region6: #{tpu_custom_call.1} parent=1 // loop_footer
      %s18 = sadd.s32 1, %s14
    $region7: #{tpu_custom_call.1} parent=1 // loop_footer_branch
      %13 = sbr.rel target = $region3
    $region8: #{tpu_custom_call.1} parent=1 // loop_exit
      _
    %1096 = vsyncpa [#allocation4], 1
    %s1097 = scalar_lea.sflag [#allocation4], 1
    %1098 = vsyncpa %s1097, 1
    %1099 = vsyncpa [#allocation7], 1
    %s1100 = scalar_lea.sflag [#allocation7], 1
    %1101 = vsyncpa %s1100, 1
    %1102 = vsyncpa [#allocation5], 1
    %s1103 = scalar_lea.sflag [#allocation5], 1
    %1104 = vsyncpa %s1103, 1

</llo_original>
